<compile_context>
chip_gen: v7x
topology: tpu7x:2x2x1
jax: 0.10.0
libtpu: 0.0.40
codegen_flags: <defaults>
</compile_context>

<pallas_src>
import functools

import numpy as np
import jax
import jax.numpy as jnp
from jax import lax
from jax.experimental import pallas as pl
from jax.experimental.pallas import tpu as pltpu

_MIB = 1024 * 1024


def _round_up(x, m):
    return ((x + m - 1) // m) * m


def _pick_tile(dim, cap, align):
    """Pick a tile <= cap for `dim`. Returns (tile, padded_dim).

    Prefers tiles that divide the align-rounded dim (so the wrapper never has
    to jnp.pad a large array); falls back to the cap with padding only if the
    best divisor would be < cap/2.
    """
    if dim <= cap:
        return dim, dim                      # full-dim block: always legal
    padded = _round_up(dim, align)
    cap_t = (cap // align) * align
    best, t = align, cap_t
    while t >= align:
        if padded % t == 0:
            best = t
            break
        t -= align
    if best * 2 >= cap_t:                    # good divisor -> no extra padding
        return best, padded
    return cap_t, _round_up(dim, cap_t)      # pay a small pad for a big tile


def _chip_config():
    kind = ""
    try:
        kind = jax.devices()[0].device_kind.lower()
    except Exception:
        pass
    two_tc = "7" in kind                                   # v7x: 2 TensorCores / chip
    big_vmem = any(t in kind for t in ("v4", "v5", "v6"))  # 128 MiB physical VMEM
    return {"two_tc": two_tc,
            "vmem_cap": (96 * _MIB) if big_vmem else (48 * _MIB)}


def _qmm_kernel(a_ref, b_ref, o_ref, *scratch, mode, k_steps, use_scratch):
    # a_ref: (BB, tm, tk), b_ref: (BB, tk, tn), o_ref: (BB, tm, tn)
    def ein(x, y, precision=None):
        return jnp.einsum("bmk,bkn->bmn", x, y,
                          preferred_element_type=jnp.float32,
                          precision=precision)

    def contract(a, b):
        if mode == "f32_3x":     # manual bf16x3 split: 3 MXU passes (~2x vs HIGHEST)
            a_hi = a.astype(jnp.bfloat16)
            a_lo = (a - a_hi.astype(jnp.float32)).astype(jnp.bfloat16)
            b_hi = b.astype(jnp.bfloat16)
            b_lo = (b - b_hi.astype(jnp.float32)).astype(jnp.bfloat16)
            return ein(a_hi, b_hi) + ein(a_lo, b_hi) + ein(a_hi, b_lo)
        if mode == "f32_full":   # full f32 emulation (~6 passes)
            return ein(a, b, precision=lax.Precision.HIGHEST)
        if mode == "bf16_1x":    # single-pass bf16 (caller opted in)
            return ein(a.astype(jnp.bfloat16), b.astype(jnp.bfloat16))
        return ein(a, b)         # native bf16/etc. inputs

    if k_steps == 1:             # fast path: no accumulator, no pl.when gates
        o_ref[...] = contract(a_ref[...], b_ref[...]).astype(o_ref.dtype)
        return

    # f32 outputs accumulate directly into the VMEM-resident output block;
    # the f32 scratch is only needed when the output dtype is narrower.
    acc_ref = scratch[0] if use_scratch else o_ref

    @pl.when(pl.program_id(3) == 0)
    def _():
        acc_ref[...] = jnp.zeros_like(acc_ref)

    acc_ref[...] += contract(a_ref[...], b_ref[...])

    if use_scratch:
        @pl.when(pl.program_id(3) == pl.num_programs(3) - 1)
        def _():
            o_ref[...] = acc_ref[...].astype(o_ref.dtype)


def quant_matmul(A, pre_act_scaling_factor_A, B, pre_act_scaling_factor_B, *,
                 precision=lax.Precision.HIGH,
                 max_tm=512, max_tn=512, max_tk=1024,
                 step_vmem_budget_bytes=16 * _MIB):
    """Pallas equivalent of QuantMatMul.forward. Returns (out, act_scaling_factor)."""
    A = jnp.asarray(A)
    B = jnp.asarray(B)
    sA = jnp.asarray(pre_act_scaling_factor_A, dtype=jnp.float32).reshape(1)
    sB = jnp.asarray(pre_act_scaling_factor_B, dtype=jnp.float32).reshape(1)

    *batch_dims, M, K = A.shape
    Kb, N = B.shape[-2], B.shape[-1]
    assert K == Kb, f"inner dims mismatch: {K} vs {Kb}"
    assert tuple(B.shape[:-2]) == tuple(batch_dims), "batch dims must match"

    out_dtype = jnp.promote_types(A.dtype, B.dtype)
    is_f32 = np.dtype(out_dtype) == np.dtype(np.float32)

    # ----- precision -> contraction mode (only meaningful for f32 inputs).
    if is_f32:
        p = precision
        if isinstance(p, str):
            p = {"default": lax.Precision.DEFAULT,
                 "high": lax.Precision.HIGH,
                 "highest": lax.Precision.HIGHEST}[p.lower()]
        mode = {lax.Precision.DEFAULT: "bf16_1x",
                lax.Precision.HIGH: "f32_3x",
                lax.Precision.HIGHEST: "f32_full"}[p]
    else:
        mode = "native"
    flop_mult = {"bf16_1x": 1, "f32_3x": 3, "f32_full": 6, "native": 1}[mode]

    BH = int(np.prod(batch_dims)) if batch_dims else 1
    A2 = A.reshape(BH, M, K).astype(out_dtype)
    B2 = B.reshape(BH, K, N).astype(out_dtype)

    # ----- tile selection.  N is rounded to a multiple of 128 for lane-dense
    # (unmasked) output stores; M/K use full-dim blocks when small.
    N_lane = _round_up(N, 128)
    tm, M_pad = _pick_tile(M, max_tm, 8)
    tn, N_pad = _pick_tile(N_lane, max_tn, 128)
    tk, K_pad = _pick_tile(K, max_tk, 128)
    m_steps, n_steps, k_steps = M_pad // tm, N_pad // tn, K_pad // tk

    use_scratch = (k_steps > 1) and not is_f32
    itemsize = int(np.dtype(out_dtype).itemsize)

    # ----- batch block: amortize the ~0.35us/step overhead within a VMEM budget.
    cfg = _chip_config()
    per_head_bytes = 2 * (tm * tk + tk * tn + tm * tn) * itemsize  # double-buffered tiles
    if use_scratch:
        per_head_bytes += tm * tn * 4
    bb_cap = max(1, int(step_vmem_budget_bytes // per_head_bytes))
    bb_cap = min(bb_cap, BH)
    if cfg["two_tc"] and (m_steps * n_steps == 1) and BH >= 2:
        # keep >=2 batch grid steps only where batch is the sole parallel axis (v7x: 2 TCs)
        bb_cap = min(bb_cap, max(1, (BH + 1) // 2))
    BB = 1
    for d in range(bb_cap, 0, -1):      # largest divisor of BH -> never pad the batch
        if BH % d == 0:
            BB = d
            break

    # ----- zero-pad only where unavoidable (K pads are exact zeros; M/N pads sliced off).
    pads_a = ((0, 0), (0, M_pad - M), (0, K_pad - K))
    pads_b = ((0, 0), (0, K_pad - K), (0, N_pad - N))
    if any(p for _, p in pads_a):
        A2 = jnp.pad(A2, pads_a)
    if any(p for _, p in pads_b):
        B2 = jnp.pad(B2, pads_b)

    grid = (BH // BB, m_steps, n_steps, k_steps)

    kernel = functools.partial(_qmm_kernel, mode=mode, k_steps=k_steps,
                               use_scratch=use_scratch)
    scratch_shapes = [pltpu.VMEM((BB, tm, tn), jnp.float32)] if use_scratch else []

    working_bytes = per_head_bytes * BB
    vmem_limit = int(min(cfg["vmem_cap"], max(32 * _MIB, working_bytes + 8 * _MIB)))

    flops = 2 * BH * M_pad * N_pad * K_pad * flop_mult
    bytes_accessed = (BH * M_pad * K_pad * n_steps      # A streamed once per N tile
                      + BH * K_pad * N_pad * m_steps    # B streamed once per M tile
                      + BH * M_pad * N_pad) * itemsize  # output written once

    out = pl.pallas_call(
        kernel,
        out_shape=jax.ShapeDtypeStruct((BH, M_pad, N_pad), out_dtype),
        grid_spec=pltpu.PrefetchScalarGridSpec(
            num_scalar_prefetch=0,
            grid=grid,
            in_specs=[
                pl.BlockSpec((BB, tm, tk), lambda b, i, j, k: (b, i, k)),  # A tile
                pl.BlockSpec((BB, tk, tn), lambda b, i, j, k: (b, k, j)),  # B tile
            ],
            out_specs=pl.BlockSpec((BB, tm, tn), lambda b, i, j, k: (b, i, j)),
            scratch_shapes=scratch_shapes,
        ),
        compiler_params=pltpu.CompilerParams(
            dimension_semantics=("parallel", "parallel", "parallel", "arbitrary"),
            vmem_limit_bytes=vmem_limit),
        cost_estimate=pl.CostEstimate(flops=int(flops), transcendentals=0,
                                      bytes_accessed=int(bytes_accessed)),
    )(A2, B2)

    act_scaling_factor = sA * sB  # shape (1,), same as the registered buffer
    if (M_pad, N_pad) != (M, N):
        out = out[:, :M, :N]
    out = out.reshape(*batch_dims, M, N)
    return out, act_scaling_factor


if __name__ == "__main__":
    key = jax.random.PRNGKey(0)
    kA, kB = jax.random.split(key)

    # Attention-like shapes: (batch=2, heads=4, seq=8, head_dim=32) x (..., 32, 16)
    batch, heads, M, K, N = 2, 4, 8, 32, 16
    A = jax.random.normal(kA, (batch, heads, M, K), dtype=jnp.float32)
    B = jax.random.normal(kB, (batch, heads, K, N), dtype=jnp.float32)
    sA = jnp.array([0.02], dtype=jnp.float32)   # pre_act_scaling_factor_A
    sB = jnp.array([0.05], dtype=jnp.float32)   # pre_act_scaling_factor_B

    out, act_sf = quant_matmul(A, sA, B, sB)
    out = jax.block_until_ready(out)
    act_sf = jax.block_until_ready(act_sf)

    # Reference: the exact PyTorch math (divide, matmul, rescale) in float64.
    A64 = np.asarray(A, dtype=np.float64)
    B64 = np.asarray(B, dtype=np.float64)
    sa, sb = float(sA[0]), float(sB[0])
    ref = ((A64 / sa) @ (B64 / sb)) * (sa * sb)

    assert out.shape == (batch, heads, M, N)
    np.testing.assert_allclose(np.asarray(out), ref, rtol=1e-4, atol=1e-4)
    np.testing.assert_allclose(np.asarray(act_sf), np.asarray(sA * sB),
                               rtol=1e-7, atol=0)

    print("KERNEL_OK")
</pallas_src>

<mosaic_0001>
module attributes {stable_mosaic.version = 11 : i64} {
  func.func @_qmm_kernel(%arg0: i32, %arg1: i32, %arg2: i32, %arg3: i32, %arg4: memref<8x8x32xf32, #tpu.memory_space<vmem>>, %arg5: memref<8x32x128xf32, #tpu.memory_space<vmem>>, %arg6: memref<8x8x128xf32, #tpu.memory_space<vmem>>) attributes {dimension_semantics = [#tpu.dimension_semantics<parallel>, #tpu.dimension_semantics<parallel>, #tpu.dimension_semantics<parallel>, #tpu.dimension_semantics<arbitrary>], iteration_bounds = array<i64: 1, 1, 1, 1>, scalar_prefetch = 0 : i64, scratch_operands = 0 : i64, tpu.core_type = #tpu.core_type<tc>, window_params = [{transform_indices = @transform_0, window_bounds = array<i64: 8, 8, 32>}, {transform_indices = @transform_1, window_bounds = array<i64: 8, 32, 128>}, {transform_indices = @transform_2, window_bounds = array<i64: 8, 8, 128>}]} {
    %c0 = arith.constant 0 : index
    %c0_0 = arith.constant 0 : index
    %c0_1 = arith.constant 0 : index
    %0 = vector.load %arg4[%c0, %c0_0, %c0_1] : memref<8x8x32xf32, #tpu.memory_space<vmem>>, vector<8x8x32xf32>
    %c0_2 = arith.constant 0 : index
    %c0_3 = arith.constant 0 : index
    %c0_4 = arith.constant 0 : index
    %1 = vector.load %arg5[%c0_2, %c0_3, %c0_4] : memref<8x32x128xf32, #tpu.memory_space<vmem>>, vector<8x32x128xf32>
    %2 = arith.truncf %0 : vector<8x8x32xf32> to vector<8x8x32xbf16>
    %3 = arith.extf %2 : vector<8x8x32xbf16> to vector<8x8x32xf32>
    %4 = arith.subf %0, %3 : vector<8x8x32xf32>
    %5 = arith.truncf %4 : vector<8x8x32xf32> to vector<8x8x32xbf16>
    %6 = arith.truncf %1 : vector<8x32x128xf32> to vector<8x32x128xbf16>
    %7 = arith.extf %6 : vector<8x32x128xbf16> to vector<8x32x128xf32>
    %8 = arith.subf %1, %7 : vector<8x32x128xf32>
    %9 = arith.truncf %8 : vector<8x32x128xf32> to vector<8x32x128xbf16>
    "tpu.trace_start"() <{level = 10 : i32, message = "bmk,bkn->bmn"}> : () -> ()
    %cst = arith.constant dense<0.000000e+00> : vector<8x8x128xf32>
    %10 = tpu.matmul %2, %6, %cst {dimension_numbers = #tpu.dot_dimension_numbers<[2], [1], [1], [2], [0, 0, 0, 1, 1, 2], [0], [0]>} : vector<8x8x32xbf16>, vector<8x32x128xbf16>, vector<8x8x128xf32> -> vector<8x8x128xf32>
    %cst_5 = arith.constant dense<0.000000e+00> : vector<8x8x128xf32>
    %11 = tpu.matmul %5, %6, %cst_5 {dimension_numbers = #tpu.dot_dimension_numbers<[2], [1], [1], [2], [0, 0, 0, 1, 1, 2], [0], [0]>} : vector<8x8x32xbf16>, vector<8x32x128xbf16>, vector<8x8x128xf32> -> vector<8x8x128xf32>
    "tpu.trace_stop"() : () -> ()
    %12 = arith.addf %10, %11 : vector<8x8x128xf32>
    "tpu.trace_start"() <{level = 10 : i32, message = "bmk,bkn->bmn"}> : () -> ()
    %cst_6 = arith.constant dense<0.000000e+00> : vector<8x8x128xf32>
    %13 = tpu.matmul %2, %9, %cst_6 {dimension_numbers = #tpu.dot_dimension_numbers<[2], [1], [1], [2], [0, 0, 0, 1, 1, 2], [0], [0]>} : vector<8x8x32xbf16>, vector<8x32x128xbf16>, vector<8x8x128xf32> -> vector<8x8x128xf32>
    "tpu.trace_stop"() : () -> ()
    %14 = arith.addf %12, %13 : vector<8x8x128xf32>
    %c0_7 = arith.constant 0 : index
    %c0_8 = arith.constant 0 : index
    %c0_9 = arith.constant 0 : index
    %15 = vector.load %arg6[%c0_7, %c0_8, %c0_9] : memref<8x8x128xf32, #tpu.memory_space<vmem>>, vector<8x8x128xf32>
    tpu.vector_store %arg6[%c0_7, %c0_8, %c0_9], %14 {strides = array<i32>} : memref<8x8x128xf32, #tpu.memory_space<vmem>>, vector<8x8x128xf32>,
    return
  }
  func.func @transform_0(%arg0: i32, %arg1: i32, %arg2: i32, %arg3: i32) -> (i32, i32, i32) {
    %c0_i32 = arith.constant 0 : i32
    return %arg0, %arg1, %arg3 : i32, i32, i32
  }
  func.func @transform_1(%arg0: i32, %arg1: i32, %arg2: i32, %arg3: i32) -> (i32, i32, i32) {
    %c0_i32 = arith.constant 0 : i32
    return %arg0, %arg3, %arg2 : i32, i32, i32
  }
  func.func @transform_2(%arg0: i32, %arg1: i32, %arg2: i32, %arg3: i32) -> (i32, i32, i32) {
    %c0_i32 = arith.constant 0 : i32
    return %arg0, %arg1, %arg2 : i32, i32, i32
  }
}

</mosaic_0001>

<llo_original>
// kernel: tpu_custom_call.1
$region0: #{tpu_custom_call.1}
  #allocation0 [shape = 'u32[]', space=smem, size = 0x4, offset = 0x4, fixed_abs, tag = 'smem constant byte address 0x4 - core index']
  #allocation1 [shape = 'u32[144,128]{1,0:T(1,128)}', space=vmem, size = 0x12000, scoped, tag = 'internal scratch']
  %s0 = inlined_call_operand.hbm [shape: f32[8,8,32], index: 0, kind: input, shape index: {}]
  %s1 = inlined_call_operand.hbm [shape: f32[8,32,128], index: 1, kind: input, shape index: {}]
  %s2 = inlined_call_operand.hbm [shape: f32[8,8,128], index: 2, kind: output, shape index: {}]
  %s3 = sld [smem:[#allocation0]]
  $region26: #{tpu_custom_call.1} parent=0
    _
  %s5 = ssub.s32 1, %s3
  %s6 = scalar_select 0, %s5, %s3
  $region1: #{tpu_custom_call.1} parent=0
    #allocation2 [shape = 'u8[32768]{0}', space=vmem, size = 0x8000, scoped, tag = 'input window, operand 0, single buffered']
    #allocation3 [shape = 's32[1]{0}', space=sflag, size = 0x4, scoped, tag = 'scoped memory for tpu_custom_call.1']
    #allocation4 [shape = 's32[1]{0}', space=sflag, size = 0x4, scoped, tag = 'scoped memory for tpu_custom_call.1']
    #allocation5 [shape = 'u8[131072]{0}', space=vmem, size = 0x20000, scoped, tag = 'input window, operand 1, single buffered']
    #allocation6 [shape = 's32[1]{0}', space=sflag, size = 0x4, scoped, tag = 'scoped memory for tpu_custom_call.1']
    #allocation7 [shape = 'u8[32768]{0}', space=vmem, size = 0x8000, scoped, tag = 'output window, operand 0, single buffered']
    %7 = vsyncpa [#allocation3], 0
    %8 = vsyncpa [#allocation6], 0
    %9 = vsyncpa [#allocation4], 0
    // Predicated region
    $region2: #{tpu_custom_call.1} parent=1 // pred_check
      _
    $region3: #{tpu_custom_call.1} parent=1 // pred_check_branch
      %11 = sbr.rel (0) target = $region5
    $region4: #{tpu_custom_call.1} parent=1 // pred_region
      %s13 = ssub.s32 1024, 1024
      %14 = vsyncadd [#allocation3], %s13
      %s15 = sshll.u32 [#allocation2], 4
      %s16 = int_to_ptr.vmem [resolvable:$true] %s15
      %21 = dma.hbm_to_vmem [thread:$0]  %s0, 1024, %s16, [#allocation3], 128, 128, 8
    $region5: #{tpu_custom_call.1} parent=1 // pred_fallthru
      _
    // Predicated region
    $region6: #{tpu_custom_call.1} parent=1 // pred_check
      _
    $region7: #{tpu_custom_call.1} parent=1 // pred_check_branch
      %23 = sbr.rel (0) target = $region9
    $region8: #{tpu_custom_call.1} parent=1 // pred_region
      %s25 = ssub.s32 4096, 4096
      %26 = vsyncadd [#allocation6], %s25
      %s27 = sshll.u32 [#allocation5], 4
      %s28 = int_to_ptr.vmem [resolvable:$true] %s27
      %33 = dma.hbm_to_vmem [thread:$0]  %s1, 4096, %s28, [#allocation6], 128, 128, 8
    $region9: #{tpu_custom_call.1} parent=1 // pred_fallthru
      _
    // Predicated region
    $region10: #{tpu_custom_call.1} parent=1 // pred_check
      _
    $region11: #{tpu_custom_call.1} parent=1 // pred_check_branch
      %35 = sbr.rel (0) target = $region13
    $region12: #{tpu_custom_call.1} parent=1 // pred_region
      %36 = dma.done [#allocation3], 1024
    $region13: #{tpu_custom_call.1} parent=1 // pred_fallthru
      _
    // Predicated region
    $region14: #{tpu_custom_call.1} parent=1 // pred_check
      _
    $region15: #{tpu_custom_call.1} parent=1 // pred_check_branch
      %38 = sbr.rel (0) target = $region17
    $region16: #{tpu_custom_call.1} parent=1 // pred_region
      %39 = dma.done [#allocation6], 4096
    $region17: #{tpu_custom_call.1} parent=1 // pred_fallthru
      _
    %v41 = vld [vmem:[#allocation2] sm:$0xff]
    %v42 = vld [vmem:[#allocation2 + $0x8] sm:$0xff]
    %v43 = vld [vmem:[#allocation2 + $0x10] sm:$0xff]
    %v44 = vld [vmem:[#allocation2 + $0x18] sm:$0xff]
    %v45 = vld [vmem:[#allocation2 + $0x20] sm:$0xff]
    %v46 = vld [vmem:[#allocation2 + $0x28] sm:$0xff]
    %v47 = vld [vmem:[#allocation2 + $0x30] sm:$0xff]
    %v48 = vld [vmem:[#allocation2 + $0x38] sm:$0xff]
    %v49 = vld [vmem:[#allocation5] sm:$0xff]
    %v50 = vld [vmem:[#allocation5 + $0x8] sm:$0xff]
    %v51 = vld [vmem:[#allocation5 + $0x10] sm:$0xff]
    %v52 = vld [vmem:[#allocation5 + $0x18] sm:$0xff]
    %v53 = vld [vmem:[#allocation5 + $0x20] sm:$0xff]
    %v54 = vld [vmem:[#allocation5 + $0x28] sm:$0xff]
    %v55 = vld [vmem:[#allocation5 + $0x30] sm:$0xff]
    %v56 = vld [vmem:[#allocation5 + $0x38] sm:$0xff]
    %v57 = vld [vmem:[#allocation5 + $0x40] sm:$0xff]
    %v58 = vld [vmem:[#allocation5 + $0x48] sm:$0xff]
    %v59 = vld [vmem:[#allocation5 + $0x50] sm:$0xff]
    %v60 = vld [vmem:[#allocation5 + $0x58] sm:$0xff]
    %v61 = vld [vmem:[#allocation5 + $0x60] sm:$0xff]
    %v62 = vld [vmem:[#allocation5 + $0x68] sm:$0xff]
    %v63 = vld [vmem:[#allocation5 + $0x70] sm:$0xff]
    %v64 = vld [vmem:[#allocation5 + $0x78] sm:$0xff]
    %v65 = vld [vmem:[#allocation5 + $0x80] sm:$0xff]
    %v66 = vld [vmem:[#allocation5 + $0x88] sm:$0xff]
    %v67 = vld [vmem:[#allocation5 + $0x90] sm:$0xff]
    %v68 = vld [vmem:[#allocation5 + $0x98] sm:$0xff]
    %v69 = vld [vmem:[#allocation5 + $0xa0] sm:$0xff]
    %v70 = vld [vmem:[#allocation5 + $0xa8] sm:$0xff]
    %v71 = vld [vmem:[#allocation5 + $0xb0] sm:$0xff]
    %v72 = vld [vmem:[#allocation5 + $0xb8] sm:$0xff]
    %v73 = vld [vmem:[#allocation5 + $0xc0] sm:$0xff]
    %v74 = vld [vmem:[#allocation5 + $0xc8] sm:$0xff]
    %v75 = vld [vmem:[#allocation5 + $0xd0] sm:$0xff]
    %v76 = vld [vmem:[#allocation5 + $0xd8] sm:$0xff]
    %v77 = vld [vmem:[#allocation5 + $0xe0] sm:$0xff]
    %v78 = vld [vmem:[#allocation5 + $0xe8] sm:$0xff]
    %v79 = vld [vmem:[#allocation5 + $0xf0] sm:$0xff]
    %v80 = vld [vmem:[#allocation5 + $0xf8] sm:$0xff]
    %v81 = vpack.c.bf16 %v41, %v41
    %v82 = vpack.c.bf16 %v42, %v42
    %v83 = vpack.c.bf16 %v43, %v43
    %v84 = vpack.c.bf16 %v44, %v44
    %v85 = vpack.c.bf16 %v45, %v45
    %v86 = vpack.c.bf16 %v46, %v46
    %v87 = vpack.c.bf16 %v47, %v47
    %v88 = vpack.c.bf16 %v48, %v48
    %v89 = vunpack.c.l.bf16 %v81
    %v90 = vunpack.c.l.bf16 %v82
    %v91 = vunpack.c.l.bf16 %v83
    %v92 = vunpack.c.l.bf16 %v84
    %v93 = vunpack.c.l.bf16 %v85
    %v94 = vunpack.c.l.bf16 %v86
    %v95 = vunpack.c.l.bf16 %v87
    %v96 = vunpack.c.l.bf16 %v88
    %v97 = vsub.f32 %v41, %v89
    %v98 = vsub.f32 %v42, %v90
    %v99 = vsub.f32 %v43, %v91
    %v100 = vsub.f32 %v44, %v92
    %v101 = vsub.f32 %v45, %v93
    %v102 = vsub.f32 %v46, %v94
    %v103 = vsub.f32 %v47, %v95
    %v104 = vsub.f32 %v48, %v96
    %v105 = vpack.c.bf16 %v97, %v97
    %v106 = vpack.c.bf16 %v98, %v98
    %v107 = vpack.c.bf16 %v99, %v99
    %v108 = vpack.c.bf16 %v100, %v100
    %v109 = vpack.c.bf16 %v101, %v101
    %v110 = vpack.c.bf16 %v102, %v102
    %v111 = vpack.c.bf16 %v103, %v103
    %v112 = vpack.c.bf16 %v104, %v104
    %v113 = vpack.c.bf16 %v50, %v49
    %v114 = vpack.c.bf16 %v52, %v51
    %v115 = vpack.c.bf16 %v54, %v53
    %v116 = vpack.c.bf16 %v56, %v55
    %v117 = vpack.c.bf16 %v58, %v57
    %v118 = vpack.c.bf16 %v60, %v59
    %v119 = vpack.c.bf16 %v62, %v61
    %v120 = vpack.c.bf16 %v64, %v63
    %v121 = vpack.c.bf16 %v66, %v65
    %v122 = vpack.c.bf16 %v68, %v67
    %v123 = vpack.c.bf16 %v70, %v69
    %v124 = vpack.c.bf16 %v72, %v71
    %v125 = vpack.c.bf16 %v74, %v73
    %v126 = vpack.c.bf16 %v76, %v75
    %v127 = vpack.c.bf16 %v78, %v77
    %v128 = vpack.c.bf16 %v80, %v79
    %v129 = vunpack.c.l.bf16 %v113
    %v130 = vunpack.c.h.bf16 %v113
    %v131 = vunpack.c.l.bf16 %v114
    %v132 = vunpack.c.h.bf16 %v114
    %v133 = vunpack.c.l.bf16 %v115
    %v134 = vunpack.c.h.bf16 %v115
    %v135 = vunpack.c.l.bf16 %v116
    %v136 = vunpack.c.h.bf16 %v116
    %v137 = vunpack.c.l.bf16 %v117
    %v138 = vunpack.c.h.bf16 %v117
    %v139 = vunpack.c.l.bf16 %v118
    %v140 = vunpack.c.h.bf16 %v118
    %v141 = vunpack.c.l.bf16 %v119
    %v142 = vunpack.c.h.bf16 %v119
    %v143 = vunpack.c.l.bf16 %v120
    %v144 = vunpack.c.h.bf16 %v120
    %v145 = vunpack.c.l.bf16 %v121
    %v146 = vunpack.c.h.bf16 %v121
    %v147 = vunpack.c.l.bf16 %v122
    %v148 = vunpack.c.h.bf16 %v122
    %v149 = vunpack.c.l.bf16 %v123
    %v150 = vunpack.c.h.bf16 %v123
    %v151 = vunpack.c.l.bf16 %v124
    %v152 = vunpack.c.h.bf16 %v124
    %v153 = vunpack.c.l.bf16 %v125
    %v154 = vunpack.c.h.bf16 %v125
    %v155 = vunpack.c.l.bf16 %v126
    %v156 = vunpack.c.h.bf16 %v126
    %v157 = vunpack.c.l.bf16 %v127
    %v158 = vunpack.c.h.bf16 %v127
    %v159 = vunpack.c.l.bf16 %v128
    %v160 = vunpack.c.h.bf16 %v128
    %v161 = vsub.f32 %v49, %v129
    %v162 = vsub.f32 %v50, %v130
    %v163 = vsub.f32 %v51, %v131
    %v164 = vsub.f32 %v52, %v132
    %v165 = vsub.f32 %v53, %v133
    %v166 = vsub.f32 %v54, %v134
    %v167 = vsub.f32 %v55, %v135
    %v168 = vsub.f32 %v56, %v136
    %v169 = vsub.f32 %v57, %v137
    %v170 = vsub.f32 %v58, %v138
    %v171 = vsub.f32 %v59, %v139
    %v172 = vsub.f32 %v60, %v140
    %v173 = vsub.f32 %v61, %v141
    %v174 = vsub.f32 %v62, %v142
    %v175 = vsub.f32 %v63, %v143
    %v176 = vsub.f32 %v64, %v144
    %v177 = vsub.f32 %v65, %v145
    %v178 = vsub.f32 %v66, %v146
    %v179 = vsub.f32 %v67, %v147
    %v180 = vsub.f32 %v68, %v148
    %v181 = vsub.f32 %v69, %v149
    %v182 = vsub.f32 %v70, %v150
    %v183 = vsub.f32 %v71, %v151
    %v184 = vsub.f32 %v72, %v152
    %v185 = vsub.f32 %v73, %v153
    %v186 = vsub.f32 %v74, %v154
    %v187 = vsub.f32 %v75, %v155
    %v188 = vsub.f32 %v76, %v156
    %v189 = vsub.f32 %v77, %v157
    %v190 = vsub.f32 %v78, %v158
    %v191 = vsub.f32 %v79, %v159
    %v192 = vsub.f32 %v80, %v160
    %v193 = vpack.c.bf16 %v162, %v161
    %v194 = vpack.c.bf16 %v164, %v163
    %v195 = vpack.c.bf16 %v166, %v165
    %v196 = vpack.c.bf16 %v168, %v167
    %v197 = vpack.c.bf16 %v170, %v169
    %v198 = vpack.c.bf16 %v172, %v171
    %v199 = vpack.c.bf16 %v174, %v173
    %v200 = vpack.c.bf16 %v176, %v175
    %v201 = vpack.c.bf16 %v178, %v177
    %v202 = vpack.c.bf16 %v180, %v179
    %v203 = vpack.c.bf16 %v182, %v181
    %v204 = vpack.c.bf16 %v184, %v183
    %v205 = vpack.c.bf16 %v186, %v185
    %v206 = vpack.c.bf16 %v188, %v187
    %v207 = vpack.c.bf16 %v190, %v189
    %v208 = vpack.c.bf16 %v192, %v191
    %vm209 = vcmask 261120
    %v211 = vsel %vm209, %v105, 0
    %213 = vmatprep.subr.bf16.mxu0 0
    %214 = vmatpush1.bf16.msra.mxu0 %v113
    %215 = vmatprep.subr.bf16.mxu0 0
    %216 = vmatpush1.bf16.msra.mxu0 %v114
    %217 = vmatprep.subr.bf16.mxu0 0
    %218 = vmatpush1.bf16.msra.mxu0 0
    %219 = vmatprep.subr.bf16.mxu0 0
    %220 = vmatpush1.bf16.msra.mxu0 0
    %221 = vmatprep.subr.bf16.mxu0 0
    %222 = vmatpush1.bf16.msra.mxu0 0
    %223 = vmatprep.subr.bf16.mxu0 0
    %224 = vmatpush1.bf16.msra.mxu0 0
    %225 = vmatprep.subr.bf16.mxu0 0
    %226 = vmatpush1.bf16.msra.mxu0 0
    %227 = vmatprep.subr.bf16.mxu0 0
    %228 = vmatpush1.bf16.msra.mxu0 0
    %229 = vmatprep.subr.bf16.mxu0 0
    %230 = vmatpush1.bf16.msra.mxu0 0
    %231 = vmatprep.subr.bf16.mxu0 0
    %232 = vmatpush1.bf16.msra.mxu0 0
    %233 = vmatprep.subr.bf16.mxu0 0
    %234 = vmatpush1.bf16.msra.mxu0 0
    %235 = vmatprep.subr.bf16.mxu0 0
    %236 = vmatpush1.bf16.msra.mxu0 0
    %237 = vmatprep.subr.bf16.mxu0 0
    %238 = vmatpush1.bf16.msra.mxu0 0
    %239 = vmatprep.subr.bf16.mxu0 0
    %240 = vmatpush1.bf16.msra.mxu0 0
    %241 = vmatprep.subr.bf16.mxu0 0
    %242 = vmatpush1.bf16.msra.mxu0 0
    %243 = vmatprep.subr.bf16.mxu0 0
    %244 = vmatpush1.bf16.msra.mxu0 0
    %245 = vmatprep.mubr.bf16.mxu0 0
    %246 = vmatmul.mubr.bf16.gmra.mrb[0].mxu0 %v211
    %v247 = vpop.f32.mrb[0].mxu0
    %v248 = vadd.f32 0.0, %v247
    %v249 = vpop.f32.mrb[0].mxu0
    %v250 = vpop.f32.mrb[0].mxu0
    %v251 = vpop.f32.mrb[0].mxu0
    %252 = vdwg.mxu0
    %v254 = vsel %vm209, %v106, 0
    %256 = vmatprep.subr.bf16.mxu0 0
    %257 = vmatpush1.bf16.msra.mxu0 %v115
    %258 = vmatprep.subr.bf16.mxu0 0
    %259 = vmatpush1.bf16.msra.mxu0 %v116
    %260 = vmatprep.subr.bf16.mxu0 0
    %261 = vmatpush1.bf16.msra.mxu0 0
    %262 = vmatprep.subr.bf16.mxu0 0
    %263 = vmatpush1.bf16.msra.mxu0 0
    %264 = vmatprep.subr.bf16.mxu0 0
    %265 = vmatpush1.bf16.msra.mxu0 0
    %266 = vmatprep.subr.bf16.mxu0 0
    %267 = vmatpush1.bf16.msra.mxu0 0
    %268 = vmatprep.subr.bf16.mxu0 0
    %269 = vmatpush1.bf16.msra.mxu0 0
    %270 = vmatprep.subr.bf16.mxu0 0
    %271 = vmatpush1.bf16.msra.mxu0 0
    %272 = vmatprep.subr.bf16.mxu0 0
    %273 = vmatpush1.bf16.msra.mxu0 0
    %274 = vmatprep.subr.bf16.mxu0 0
    %275 = vmatpush1.bf16.msra.mxu0 0
    %276 = vmatprep.subr.bf16.mxu0 0
    %277 = vmatpush1.bf16.msra.mxu0 0
    %278 = vmatprep.subr.bf16.mxu0 0
    %279 = vmatpush1.bf16.msra.mxu0 0
    %280 = vmatprep.subr.bf16.mxu0 0
    %281 = vmatpush1.bf16.msra.mxu0 0
    %282 = vmatprep.subr.bf16.mxu0 0
    %283 = vmatpush1.bf16.msra.mxu0 0
    %284 = vmatprep.subr.bf16.mxu0 0
    %285 = vmatpush1.bf16.msra.mxu0 0
    %286 = vmatprep.subr.bf16.mxu0 0
    %287 = vmatpush1.bf16.msra.mxu0 0
    %288 = vmatprep.mubr.bf16.mxu0 0
    %289 = vmatmul.mubr.bf16.gmra.mrb[0].mxu0 %v254
    %v290 = vpop.f32.mrb[0].mxu0
    %v291 = vadd.f32 0.0, %v290
    %v292 = vpop.f32.mrb[0].mxu0
    %v293 = vpop.f32.mrb[0].mxu0
    %v294 = vpop.f32.mrb[0].mxu0
    %295 = vdwg.mxu0
    %v297 = vsel %vm209, %v107, 0
    %299 = vmatprep.subr.bf16.mxu0 0
    %300 = vmatpush1.bf16.msra.mxu0 %v117
    %301 = vmatprep.subr.bf16.mxu0 0
    %302 = vmatpush1.bf16.msra.mxu0 %v118
    %303 = vmatprep.subr.bf16.mxu0 0
    %304 = vmatpush1.bf16.msra.mxu0 0
    %305 = vmatprep.subr.bf16.mxu0 0
    %306 = vmatpush1.bf16.msra.mxu0 0
    %307 = vmatprep.subr.bf16.mxu0 0
    %308 = vmatpush1.bf16.msra.mxu0 0
    %309 = vmatprep.subr.bf16.mxu0 0
    %310 = vmatpush1.bf16.msra.mxu0 0
    %311 = vmatprep.subr.bf16.mxu0 0
    %312 = vmatpush1.bf16.msra.mxu0 0
    %313 = vmatprep.subr.bf16.mxu0 0
    %314 = vmatpush1.bf16.msra.mxu0 0
    %315 = vmatprep.subr.bf16.mxu0 0
    %316 = vmatpush1.bf16.msra.mxu0 0
    %317 = vmatprep.subr.bf16.mxu0 0
    %318 = vmatpush1.bf16.msra.mxu0 0
    %319 = vmatprep.subr.bf16.mxu0 0
    %320 = vmatpush1.bf16.msra.mxu0 0
    %321 = vmatprep.subr.bf16.mxu0 0
    %322 = vmatpush1.bf16.msra.mxu0 0
    %323 = vmatprep.subr.bf16.mxu0 0
    %324 = vmatpush1.bf16.msra.mxu0 0
    %325 = vmatprep.subr.bf16.mxu0 0
    %326 = vmatpush1.bf16.msra.mxu0 0
    %327 = vmatprep.subr.bf16.mxu0 0
    %328 = vmatpush1.bf16.msra.mxu0 0
    %329 = vmatprep.subr.bf16.mxu0 0
    %330 = vmatpush1.bf16.msra.mxu0 0
    %331 = vmatprep.mubr.bf16.mxu0 0
    %332 = vmatmul.mubr.bf16.gmra.mrb[0].mxu0 %v297
    %v333 = vpop.f32.mrb[0].mxu0
    %v334 = vadd.f32 0.0, %v333
    %v335 = vpop.f32.mrb[0].mxu0
    %v336 = vpop.f32.mrb[0].mxu0
    %v337 = vpop.f32.mrb[0].mxu0
    %338 = vdwg.mxu0
    %v340 = vsel %vm209, %v108, 0
    %342 = vmatprep.subr.bf16.mxu0 0
    %343 = vmatpush1.bf16.msra.mxu0 %v119
    %344 = vmatprep.subr.bf16.mxu0 0
    %345 = vmatpush1.bf16.msra.mxu0 %v120
    %346 = vmatprep.subr.bf16.mxu0 0
    %347 = vmatpush1.bf16.msra.mxu0 0
    %348 = vmatprep.subr.bf16.mxu0 0
    %349 = vmatpush1.bf16.msra.mxu0 0
    %350 = vmatprep.subr.bf16.mxu0 0
    %351 = vmatpush1.bf16.msra.mxu0 0
    %352 = vmatprep.subr.bf16.mxu0 0
    %353 = vmatpush1.bf16.msra.mxu0 0
    %354 = vmatprep.subr.bf16.mxu0 0
    %355 = vmatpush1.bf16.msra.mxu0 0
    %356 = vmatprep.subr.bf16.mxu0 0
    %357 = vmatpush1.bf16.msra.mxu0 0
    %358 = vmatprep.subr.bf16.mxu0 0
    %359 = vmatpush1.bf16.msra.mxu0 0
    %360 = vmatprep.subr.bf16.mxu0 0
    %361 = vmatpush1.bf16.msra.mxu0 0
    %362 = vmatprep.subr.bf16.mxu0 0
    %363 = vmatpush1.bf16.msra.mxu0 0
    %364 = vmatprep.subr.bf16.mxu0 0
    %365 = vmatpush1.bf16.msra.mxu0 0
    %366 = vmatprep.subr.bf16.mxu0 0
    %367 = vmatpush1.bf16.msra.mxu0 0
    %368 = vmatprep.subr.bf16.mxu0 0
    %369 = vmatpush1.bf16.msra.mxu0 0
    %370 = vmatprep.subr.bf16.mxu0 0
    %371 = vmatpush1.bf16.msra.mxu0 0
    %372 = vmatprep.subr.bf16.mxu0 0
    %373 = vmatpush1.bf16.msra.mxu0 0
    %374 = vmatprep.mubr.bf16.mxu0 0
    %375 = vmatmul.mubr.bf16.gmra.mrb[0].mxu0 %v340
    %v376 = vpop.f32.mrb[0].mxu0
    %v377 = vadd.f32 0.0, %v376
    %v378 = vpop.f32.mrb[0].mxu0
    %v379 = vpop.f32.mrb[0].mxu0
    %v380 = vpop.f32.mrb[0].mxu0
    %381 = vdwg.mxu0
    %v383 = vsel %vm209, %v109, 0
    %385 = vmatprep.subr.bf16.mxu0 0
    %386 = vmatpush1.bf16.msra.mxu0 %v121
    %387 = vmatprep.subr.bf16.mxu0 0
    %388 = vmatpush1.bf16.msra.mxu0 %v122
    %389 = vmatprep.subr.bf16.mxu0 0
    %390 = vmatpush1.bf16.msra.mxu0 0
    %391 = vmatprep.subr.bf16.mxu0 0
    %392 = vmatpush1.bf16.msra.mxu0 0
    %393 = vmatprep.subr.bf16.mxu0 0
    %394 = vmatpush1.bf16.msra.mxu0 0
    %395 = vmatprep.subr.bf16.mxu0 0
    %396 = vmatpush1.bf16.msra.mxu0 0
    %397 = vmatprep.subr.bf16.mxu0 0
    %398 = vmatpush1.bf16.msra.mxu0 0
    %399 = vmatprep.subr.bf16.mxu0 0
    %400 = vmatpush1.bf16.msra.mxu0 0
    %401 = vmatprep.subr.bf16.mxu0 0
    %402 = vmatpush1.bf16.msra.mxu0 0
    %403 = vmatprep.subr.bf16.mxu0 0
    %404 = vmatpush1.bf16.msra.mxu0 0
    %405 = vmatprep.subr.bf16.mxu0 0
    %406 = vmatpush1.bf16.msra.mxu0 0
    %407 = vmatprep.subr.bf16.mxu0 0
    %408 = vmatpush1.bf16.msra.mxu0 0
    %409 = vmatprep.subr.bf16.mxu0 0
    %410 = vmatpush1.bf16.msra.mxu0 0
    %411 = vmatprep.subr.bf16.mxu0 0
    %412 = vmatpush1.bf16.msra.mxu0 0
    %413 = vmatprep.subr.bf16.mxu0 0
    %414 = vmatpush1.bf16.msra.mxu0 0
    %415 = vmatprep.subr.bf16.mxu0 0
    %416 = vmatpush1.bf16.msra.mxu0 0
    %417 = vmatprep.mubr.bf16.mxu0 0
    %418 = vmatmul.mubr.bf16.gmra.mrb[0].mxu0 %v383
    %v419 = vpop.f32.mrb[0].mxu0
    %v420 = vadd.f32 0.0, %v419
    %v421 = vpop.f32.mrb[0].mxu0
    %v422 = vpop.f32.mrb[0].mxu0
    %v423 = vpop.f32.mrb[0].mxu0
    %424 = vdwg.mxu0
    %v426 = vsel %vm209, %v110, 0
    %428 = vmatprep.subr.bf16.mxu0 0
    %429 = vmatpush1.bf16.msra.mxu0 %v123
    %430 = vmatprep.subr.bf16.mxu0 0
    %431 = vmatpush1.bf16.msra.mxu0 %v124
    %432 = vmatprep.subr.bf16.mxu0 0
    %433 = vmatpush1.bf16.msra.mxu0 0
    %434 = vmatprep.subr.bf16.mxu0 0
    %435 = vmatpush1.bf16.msra.mxu0 0
    %436 = vmatprep.subr.bf16.mxu0 0
    %437 = vmatpush1.bf16.msra.mxu0 0
    %438 = vmatprep.subr.bf16.mxu0 0
    %439 = vmatpush1.bf16.msra.mxu0 0
    %440 = vmatprep.subr.bf16.mxu0 0
    %441 = vmatpush1.bf16.msra.mxu0 0
    %442 = vmatprep.subr.bf16.mxu0 0
    %443 = vmatpush1.bf16.msra.mxu0 0
    %444 = vmatprep.subr.bf16.mxu0 0
    %445 = vmatpush1.bf16.msra.mxu0 0
    %446 = vmatprep.subr.bf16.mxu0 0
    %447 = vmatpush1.bf16.msra.mxu0 0
    %448 = vmatprep.subr.bf16.mxu0 0
    %449 = vmatpush1.bf16.msra.mxu0 0
    %450 = vmatprep.subr.bf16.mxu0 0
    %451 = vmatpush1.bf16.msra.mxu0 0
    %452 = vmatprep.subr.bf16.mxu0 0
    %453 = vmatpush1.bf16.msra.mxu0 0
    %454 = vmatprep.subr.bf16.mxu0 0
    %455 = vmatpush1.bf16.msra.mxu0 0
    %456 = vmatprep.subr.bf16.mxu0 0
    %457 = vmatpush1.bf16.msra.mxu0 0
    %458 = vmatprep.subr.bf16.mxu0 0
    %459 = vmatpush1.bf16.msra.mxu0 0
    %460 = vmatprep.mubr.bf16.mxu0 0
    %461 = vmatmul.mubr.bf16.gmra.mrb[0].mxu0 %v426
    %v462 = vpop.f32.mrb[0].mxu0
    %v463 = vadd.f32 0.0, %v462
    %v464 = vpop.f32.mrb[0].mxu0
    %v465 = vpop.f32.mrb[0].mxu0
    %v466 = vpop.f32.mrb[0].mxu0
    %467 = vdwg.mxu0
    %v469 = vsel %vm209, %v111, 0
    %471 = vmatprep.subr.bf16.mxu0 0
    %472 = vmatpush1.bf16.msra.mxu0 %v125
    %473 = vmatprep.subr.bf16.mxu0 0
    %474 = vmatpush1.bf16.msra.mxu0 %v126
    %475 = vmatprep.subr.bf16.mxu0 0
    %476 = vmatpush1.bf16.msra.mxu0 0
    %477 = vmatprep.subr.bf16.mxu0 0
    %478 = vmatpush1.bf16.msra.mxu0 0
    %479 = vmatprep.subr.bf16.mxu0 0
    %480 = vmatpush1.bf16.msra.mxu0 0
    %481 = vmatprep.subr.bf16.mxu0 0
    %482 = vmatpush1.bf16.msra.mxu0 0
    %483 = vmatprep.subr.bf16.mxu0 0
    %484 = vmatpush1.bf16.msra.mxu0 0
    %485 = vmatprep.subr.bf16.mxu0 0
    %486 = vmatpush1.bf16.msra.mxu0 0
    %487 = vmatprep.subr.bf16.mxu0 0
    %488 = vmatpush1.bf16.msra.mxu0 0
    %489 = vmatprep.subr.bf16.mxu0 0
    %490 = vmatpush1.bf16.msra.mxu0 0
    %491 = vmatprep.subr.bf16.mxu0 0
    %492 = vmatpush1.bf16.msra.mxu0 0
    %493 = vmatprep.subr.bf16.mxu0 0
    %494 = vmatpush1.bf16.msra.mxu0 0
    %495 = vmatprep.subr.bf16.mxu0 0
    %496 = vmatpush1.bf16.msra.mxu0 0
    %497 = vmatprep.subr.bf16.mxu0 0
    %498 = vmatpush1.bf16.msra.mxu0 0
    %499 = vmatprep.subr.bf16.mxu0 0
    %500 = vmatpush1.bf16.msra.mxu0 0
    %501 = vmatprep.subr.bf16.mxu0 0
    %502 = vmatpush1.bf16.msra.mxu0 0
    %503 = vmatprep.mubr.bf16.mxu0 0
    %504 = vmatmul.mubr.bf16.gmra.mrb[0].mxu0 %v469
    %v505 = vpop.f32.mrb[0].mxu0
    %v506 = vadd.f32 0.0, %v505
    %v507 = vpop.f32.mrb[0].mxu0
    %v508 = vpop.f32.mrb[0].mxu0
    %v509 = vpop.f32.mrb[0].mxu0
    %510 = vdwg.mxu0
    %v512 = vsel %vm209, %v112, 0
    %514 = vmatprep.subr.bf16.mxu0 0
    %515 = vmatpush1.bf16.msra.mxu0 %v127
    %516 = vmatprep.subr.bf16.mxu0 0
    %517 = vmatpush1.bf16.msra.mxu0 %v128
    %518 = vmatprep.subr.bf16.mxu0 0
    %519 = vmatpush1.bf16.msra.mxu0 0
    %520 = vmatprep.subr.bf16.mxu0 0
    %521 = vmatpush1.bf16.msra.mxu0 0
    %522 = vmatprep.subr.bf16.mxu0 0
    %523 = vmatpush1.bf16.msra.mxu0 0
    %524 = vmatprep.subr.bf16.mxu0 0
    %525 = vmatpush1.bf16.msra.mxu0 0
    %526 = vmatprep.subr.bf16.mxu0 0
    %527 = vmatpush1.bf16.msra.mxu0 0
    %528 = vmatprep.subr.bf16.mxu0 0
    %529 = vmatpush1.bf16.msra.mxu0 0
    %530 = vmatprep.subr.bf16.mxu0 0
    %531 = vmatpush1.bf16.msra.mxu0 0
    %532 = vmatprep.subr.bf16.mxu0 0
    %533 = vmatpush1.bf16.msra.mxu0 0
    %534 = vmatprep.subr.bf16.mxu0 0
    %535 = vmatpush1.bf16.msra.mxu0 0
    %536 = vmatprep.subr.bf16.mxu0 0
    %537 = vmatpush1.bf16.msra.mxu0 0
    %538 = vmatprep.subr.bf16.mxu0 0
    %539 = vmatpush1.bf16.msra.mxu0 0
    %540 = vmatprep.subr.bf16.mxu0 0
    %541 = vmatpush1.bf16.msra.mxu0 0
    %542 = vmatprep.subr.bf16.mxu0 0
    %543 = vmatpush1.bf16.msra.mxu0 0
    %544 = vmatprep.subr.bf16.mxu0 0
    %545 = vmatpush1.bf16.msra.mxu0 0
    %546 = vmatprep.mubr.bf16.mxu0 0
    %547 = vmatmul.mubr.bf16.gmra.mrb[0].mxu0 %v512
    %v548 = vpop.f32.mrb[0].mxu0
    %v549 = vadd.f32 0.0, %v548
    %v550 = vpop.f32.mrb[0].mxu0
    %v551 = vpop.f32.mrb[0].mxu0
    %v552 = vpop.f32.mrb[0].mxu0
    %553 = vdwg.mxu0
    %v555 = vsel %vm209, %v81, 0
    %557 = vmatprep.subr.bf16.mxu0 0
    %558 = vmatpush1.bf16.msra.mxu0 %v113
    %559 = vmatprep.subr.bf16.mxu0 0
    %560 = vmatpush1.bf16.msra.mxu0 %v114
    %561 = vmatprep.subr.bf16.mxu0 0
    %562 = vmatpush1.bf16.msra.mxu0 0
    %563 = vmatprep.subr.bf16.mxu0 0
    %564 = vmatpush1.bf16.msra.mxu0 0
    %565 = vmatprep.subr.bf16.mxu0 0
    %566 = vmatpush1.bf16.msra.mxu0 0
    %567 = vmatprep.subr.bf16.mxu0 0
    %568 = vmatpush1.bf16.msra.mxu0 0
    %569 = vmatprep.subr.bf16.mxu0 0
    %570 = vmatpush1.bf16.msra.mxu0 0
    %571 = vmatprep.subr.bf16.mxu0 0
    %572 = vmatpush1.bf16.msra.mxu0 0
    %573 = vmatprep.subr.bf16.mxu0 0
    %574 = vmatpush1.bf16.msra.mxu0 0
    %575 = vmatprep.subr.bf16.mxu0 0
    %576 = vmatpush1.bf16.msra.mxu0 0
    %577 = vmatprep.subr.bf16.mxu0 0
    %578 = vmatpush1.bf16.msra.mxu0 0
    %579 = vmatprep.subr.bf16.mxu0 0
    %580 = vmatpush1.bf16.msra.mxu0 0
    %581 = vmatprep.subr.bf16.mxu0 0
    %582 = vmatpush1.bf16.msra.mxu0 0
    %583 = vmatprep.subr.bf16.mxu0 0
    %584 = vmatpush1.bf16.msra.mxu0 0
    %585 = vmatprep.subr.bf16.mxu0 0
    %586 = vmatpush1.bf16.msra.mxu0 0
    %587 = vmatprep.subr.bf16.mxu0 0
    %588 = vmatpush1.bf16.msra.mxu0 0
    %589 = vmatprep.mubr.bf16.mxu0 0
    %590 = vmatmul.mubr.bf16.gmra.mrb[0].mxu0 %v555
    %v591 = vpop.f32.mrb[0].mxu0
    %v592 = vadd.f32 %v248, %v591
    %v593 = vpop.f32.mrb[0].mxu0
    %v594 = vpop.f32.mrb[0].mxu0
    %v595 = vpop.f32.mrb[0].mxu0
    %596 = vdwg.mxu0
    %v598 = vsel %vm209, %v82, 0
    %600 = vmatprep.subr.bf16.mxu0 0
    %601 = vmatpush1.bf16.msra.mxu0 %v115
    %602 = vmatprep.subr.bf16.mxu0 0
    %603 = vmatpush1.bf16.msra.mxu0 %v116
    %604 = vmatprep.subr.bf16.mxu0 0
    %605 = vmatpush1.bf16.msra.mxu0 0
    %606 = vmatprep.subr.bf16.mxu0 0
    %607 = vmatpush1.bf16.msra.mxu0 0
    %608 = vmatprep.subr.bf16.mxu0 0
    %609 = vmatpush1.bf16.msra.mxu0 0
    %610 = vmatprep.subr.bf16.mxu0 0
    %611 = vmatpush1.bf16.msra.mxu0 0
    %612 = vmatprep.subr.bf16.mxu0 0
    %613 = vmatpush1.bf16.msra.mxu0 0
    %614 = vmatprep.subr.bf16.mxu0 0
    %615 = vmatpush1.bf16.msra.mxu0 0
    %616 = vmatprep.subr.bf16.mxu0 0
    %617 = vmatpush1.bf16.msra.mxu0 0
    %618 = vmatprep.subr.bf16.mxu0 0
    %619 = vmatpush1.bf16.msra.mxu0 0
    %620 = vmatprep.subr.bf16.mxu0 0
    %621 = vmatpush1.bf16.msra.mxu0 0
    %622 = vmatprep.subr.bf16.mxu0 0
    %623 = vmatpush1.bf16.msra.mxu0 0
    %624 = vmatprep.subr.bf16.mxu0 0
    %625 = vmatpush1.bf16.msra.mxu0 0
    %626 = vmatprep.subr.bf16.mxu0 0
    %627 = vmatpush1.bf16.msra.mxu0 0
    %628 = vmatprep.subr.bf16.mxu0 0
    %629 = vmatpush1.bf16.msra.mxu0 0
    %630 = vmatprep.subr.bf16.mxu0 0
    %631 = vmatpush1.bf16.msra.mxu0 0
    %632 = vmatprep.mubr.bf16.mxu0 0
    %633 = vmatmul.mubr.bf16.gmra.mrb[0].mxu0 %v598
    %v634 = vpop.f32.mrb[0].mxu0
    %v635 = vadd.f32 %v291, %v634
    %v636 = vpop.f32.mrb[0].mxu0
    %v637 = vpop.f32.mrb[0].mxu0
    %v638 = vpop.f32.mrb[0].mxu0
    %639 = vdwg.mxu0
    %v641 = vsel %vm209, %v83, 0
    %643 = vmatprep.subr.bf16.mxu0 0
    %644 = vmatpush1.bf16.msra.mxu0 %v117
    %645 = vmatprep.subr.bf16.mxu0 0
    %646 = vmatpush1.bf16.msra.mxu0 %v118
    %647 = vmatprep.subr.bf16.mxu0 0
    %648 = vmatpush1.bf16.msra.mxu0 0
    %649 = vmatprep.subr.bf16.mxu0 0
    %650 = vmatpush1.bf16.msra.mxu0 0
    %651 = vmatprep.subr.bf16.mxu0 0
    %652 = vmatpush1.bf16.msra.mxu0 0
    %653 = vmatprep.subr.bf16.mxu0 0
    %654 = vmatpush1.bf16.msra.mxu0 0
    %655 = vmatprep.subr.bf16.mxu0 0
    %656 = vmatpush1.bf16.msra.mxu0 0
    %657 = vmatprep.subr.bf16.mxu0 0
    %658 = vmatpush1.bf16.msra.mxu0 0
    %659 = vmatprep.subr.bf16.mxu0 0
    %660 = vmatpush1.bf16.msra.mxu0 0
    %661 = vmatprep.subr.bf16.mxu0 0
    %662 = vmatpush1.bf16.msra.mxu0 0
    %663 = vmatprep.subr.bf16.mxu0 0
    %664 = vmatpush1.bf16.msra.mxu0 0
    %665 = vmatprep.subr.bf16.mxu0 0
    %666 = vmatpush1.bf16.msra.mxu0 0
    %667 = vmatprep.subr.bf16.mxu0 0
    %668 = vmatpush1.bf16.msra.mxu0 0
    %669 = vmatprep.subr.bf16.mxu0 0
    %670 = vmatpush1.bf16.msra.mxu0 0
    %671 = vmatprep.subr.bf16.mxu0 0
    %672 = vmatpush1.bf16.msra.mxu0 0
    %673 = vmatprep.subr.bf16.mxu0 0
    %674 = vmatpush1.bf16.msra.mxu0 0
    %675 = vmatprep.mubr.bf16.mxu0 0
    %676 = vmatmul.mubr.bf16.gmra.mrb[0].mxu0 %v641
    %v677 = vpop.f32.mrb[0].mxu0
    %v678 = vadd.f32 %v334, %v677
    %v679 = vpop.f32.mrb[0].mxu0
    %v680 = vpop.f32.mrb[0].mxu0
    %v681 = vpop.f32.mrb[0].mxu0
    %682 = vdwg.mxu0
    %v684 = vsel %vm209, %v84, 0
    %686 = vmatprep.subr.bf16.mxu0 0
    %687 = vmatpush1.bf16.msra.mxu0 %v119
    %688 = vmatprep.subr.bf16.mxu0 0
    %689 = vmatpush1.bf16.msra.mxu0 %v120
    %690 = vmatprep.subr.bf16.mxu0 0
    %691 = vmatpush1.bf16.msra.mxu0 0
    %692 = vmatprep.subr.bf16.mxu0 0
    %693 = vmatpush1.bf16.msra.mxu0 0
    %694 = vmatprep.subr.bf16.mxu0 0
    %695 = vmatpush1.bf16.msra.mxu0 0
    %696 = vmatprep.subr.bf16.mxu0 0
    %697 = vmatpush1.bf16.msra.mxu0 0
    %698 = vmatprep.subr.bf16.mxu0 0
    %699 = vmatpush1.bf16.msra.mxu0 0
    %700 = vmatprep.subr.bf16.mxu0 0
    %701 = vmatpush1.bf16.msra.mxu0 0
    %702 = vmatprep.subr.bf16.mxu0 0
    %703 = vmatpush1.bf16.msra.mxu0 0
    %704 = vmatprep.subr.bf16.mxu0 0
    %705 = vmatpush1.bf16.msra.mxu0 0
    %706 = vmatprep.subr.bf16.mxu0 0
    %707 = vmatpush1.bf16.msra.mxu0 0
    %708 = vmatprep.subr.bf16.mxu0 0
    %709 = vmatpush1.bf16.msra.mxu0 0
    %710 = vmatprep.subr.bf16.mxu0 0
    %711 = vmatpush1.bf16.msra.mxu0 0
    %712 = vmatprep.subr.bf16.mxu0 0
    %713 = vmatpush1.bf16.msra.mxu0 0
    %714 = vmatprep.subr.bf16.mxu0 0
    %715 = vmatpush1.bf16.msra.mxu0 0
    %716 = vmatprep.subr.bf16.mxu0 0
    %717 = vmatpush1.bf16.msra.mxu0 0
    %718 = vmatprep.mubr.bf16.mxu0 0
    %719 = vmatmul.mubr.bf16.gmra.mrb[0].mxu0 %v684
    %v720 = vpop.f32.mrb[0].mxu0
    %v721 = vadd.f32 %v377, %v720
    %v722 = vpop.f32.mrb[0].mxu0
    %v723 = vpop.f32.mrb[0].mxu0
    %v724 = vpop.f32.mrb[0].mxu0
    %725 = vdwg.mxu0
    %v727 = vsel %vm209, %v85, 0
    %729 = vmatprep.subr.bf16.mxu0 0
    %730 = vmatpush1.bf16.msra.mxu0 %v121
    %731 = vmatprep.subr.bf16.mxu0 0
    %732 = vmatpush1.bf16.msra.mxu0 %v122
    %733 = vmatprep.subr.bf16.mxu0 0
    %734 = vmatpush1.bf16.msra.mxu0 0
    %735 = vmatprep.subr.bf16.mxu0 0
    %736 = vmatpush1.bf16.msra.mxu0 0
    %737 = vmatprep.subr.bf16.mxu0 0
    %738 = vmatpush1.bf16.msra.mxu0 0
    %739 = vmatprep.subr.bf16.mxu0 0
    %740 = vmatpush1.bf16.msra.mxu0 0
    %741 = vmatprep.subr.bf16.mxu0 0
    %742 = vmatpush1.bf16.msra.mxu0 0
    %743 = vmatprep.subr.bf16.mxu0 0
    %744 = vmatpush1.bf16.msra.mxu0 0
    %745 = vmatprep.subr.bf16.mxu0 0
    %746 = vmatpush1.bf16.msra.mxu0 0
    %747 = vmatprep.subr.bf16.mxu0 0
    %748 = vmatpush1.bf16.msra.mxu0 0
    %749 = vmatprep.subr.bf16.mxu0 0
    %750 = vmatpush1.bf16.msra.mxu0 0
    %751 = vmatprep.subr.bf16.mxu0 0
    %752 = vmatpush1.bf16.msra.mxu0 0
    %753 = vmatprep.subr.bf16.mxu0 0
    %754 = vmatpush1.bf16.msra.mxu0 0
    %755 = vmatprep.subr.bf16.mxu0 0
    %756 = vmatpush1.bf16.msra.mxu0 0
    %757 = vmatprep.subr.bf16.mxu0 0
    %758 = vmatpush1.bf16.msra.mxu0 0
    %759 = vmatprep.subr.bf16.mxu0 0
    %760 = vmatpush1.bf16.msra.mxu0 0
    %761 = vmatprep.mubr.bf16.mxu0 0
    %762 = vmatmul.mubr.bf16.gmra.mrb[0].mxu0 %v727
    %v763 = vpop.f32.mrb[0].mxu0
    %v764 = vadd.f32 %v420, %v763
    %v765 = vpop.f32.mrb[0].mxu0
    %v766 = vpop.f32.mrb[0].mxu0
    %v767 = vpop.f32.mrb[0].mxu0
    %768 = vdwg.mxu0
    %v770 = vsel %vm209, %v86, 0
    %772 = vmatprep.subr.bf16.mxu0 0
    %773 = vmatpush1.bf16.msra.mxu0 %v123
    %774 = vmatprep.subr.bf16.mxu0 0
    %775 = vmatpush1.bf16.msra.mxu0 %v124
    %776 = vmatprep.subr.bf16.mxu0 0
    %777 = vmatpush1.bf16.msra.mxu0 0
    %778 = vmatprep.subr.bf16.mxu0 0
    %779 = vmatpush1.bf16.msra.mxu0 0
    %780 = vmatprep.subr.bf16.mxu0 0
    %781 = vmatpush1.bf16.msra.mxu0 0
    %782 = vmatprep.subr.bf16.mxu0 0
    %783 = vmatpush1.bf16.msra.mxu0 0
    %784 = vmatprep.subr.bf16.mxu0 0
    %785 = vmatpush1.bf16.msra.mxu0 0
    %786 = vmatprep.subr.bf16.mxu0 0
    %787 = vmatpush1.bf16.msra.mxu0 0
    %788 = vmatprep.subr.bf16.mxu0 0
    %789 = vmatpush1.bf16.msra.mxu0 0
    %790 = vmatprep.subr.bf16.mxu0 0
    %791 = vmatpush1.bf16.msra.mxu0 0
    %792 = vmatprep.subr.bf16.mxu0 0
    %793 = vmatpush1.bf16.msra.mxu0 0
    %794 = vmatprep.subr.bf16.mxu0 0
    %795 = vmatpush1.bf16.msra.mxu0 0
    %796 = vmatprep.subr.bf16.mxu0 0
    %797 = vmatpush1.bf16.msra.mxu0 0
    %798 = vmatprep.subr.bf16.mxu0 0
    %799 = vmatpush1.bf16.msra.mxu0 0
    %800 = vmatprep.subr.bf16.mxu0 0
    %801 = vmatpush1.bf16.msra.mxu0 0
    %802 = vmatprep.subr.bf16.mxu0 0
    %803 = vmatpush1.bf16.msra.mxu0 0
    %804 = vmatprep.mubr.bf16.mxu0 0
    %805 = vmatmul.mubr.bf16.gmra.mrb[0].mxu0 %v770
    %v806 = vpop.f32.mrb[0].mxu0
    %v807 = vadd.f32 %v463, %v806
    %v808 = vpop.f32.mrb[0].mxu0
    %v809 = vpop.f32.mrb[0].mxu0
    %v810 = vpop.f32.mrb[0].mxu0
    %811 = vdwg.mxu0
    %v813 = vsel %vm209, %v87, 0
    %815 = vmatprep.subr.bf16.mxu0 0
    %816 = vmatpush1.bf16.msra.mxu0 %v125
    %817 = vmatprep.subr.bf16.mxu0 0
    %818 = vmatpush1.bf16.msra.mxu0 %v126
    %819 = vmatprep.subr.bf16.mxu0 0
    %820 = vmatpush1.bf16.msra.mxu0 0
    %821 = vmatprep.subr.bf16.mxu0 0
    %822 = vmatpush1.bf16.msra.mxu0 0
    %823 = vmatprep.subr.bf16.mxu0 0
    %824 = vmatpush1.bf16.msra.mxu0 0
    %825 = vmatprep.subr.bf16.mxu0 0
    %826 = vmatpush1.bf16.msra.mxu0 0
    %827 = vmatprep.subr.bf16.mxu0 0
    %828 = vmatpush1.bf16.msra.mxu0 0
    %829 = vmatprep.subr.bf16.mxu0 0
    %830 = vmatpush1.bf16.msra.mxu0 0
    %831 = vmatprep.subr.bf16.mxu0 0
    %832 = vmatpush1.bf16.msra.mxu0 0
    %833 = vmatprep.subr.bf16.mxu0 0
    %834 = vmatpush1.bf16.msra.mxu0 0
    %835 = vmatprep.subr.bf16.mxu0 0
    %836 = vmatpush1.bf16.msra.mxu0 0
    %837 = vmatprep.subr.bf16.mxu0 0
    %838 = vmatpush1.bf16.msra.mxu0 0
    %839 = vmatprep.subr.bf16.mxu0 0
    %840 = vmatpush1.bf16.msra.mxu0 0
    %841 = vmatprep.subr.bf16.mxu0 0
    %842 = vmatpush1.bf16.msra.mxu0 0
    %843 = vmatprep.subr.bf16.mxu0 0
    %844 = vmatpush1.bf16.msra.mxu0 0
    %845 = vmatprep.subr.bf16.mxu0 0
    %846 = vmatpush1.bf16.msra.mxu0 0
    %847 = vmatprep.mubr.bf16.mxu0 0
    %848 = vmatmul.mubr.bf16.gmra.mrb[0].mxu0 %v813
    %v849 = vpop.f32.mrb[0].mxu0
    %v850 = vadd.f32 %v506, %v849
    %v851 = vpop.f32.mrb[0].mxu0
    %v852 = vpop.f32.mrb[0].mxu0
    %v853 = vpop.f32.mrb[0].mxu0
    %854 = vdwg.mxu0
    %v856 = vsel %vm209, %v88, 0
    %858 = vmatprep.subr.bf16.mxu0 0
    %859 = vmatpush1.bf16.msra.mxu0 %v127
    %860 = vmatprep.subr.bf16.mxu0 0
    %861 = vmatpush1.bf16.msra.mxu0 %v128
    %862 = vmatprep.subr.bf16.mxu0 0
    %863 = vmatpush1.bf16.msra.mxu0 0
    %864 = vmatprep.subr.bf16.mxu0 0
    %865 = vmatpush1.bf16.msra.mxu0 0
    %866 = vmatprep.subr.bf16.mxu0 0
    %867 = vmatpush1.bf16.msra.mxu0 0
    %868 = vmatprep.subr.bf16.mxu0 0
    %869 = vmatpush1.bf16.msra.mxu0 0
    %870 = vmatprep.subr.bf16.mxu0 0
    %871 = vmatpush1.bf16.msra.mxu0 0
    %872 = vmatprep.subr.bf16.mxu0 0
    %873 = vmatpush1.bf16.msra.mxu0 0
    %874 = vmatprep.subr.bf16.mxu0 0
    %875 = vmatpush1.bf16.msra.mxu0 0
    %876 = vmatprep.subr.bf16.mxu0 0
    %877 = vmatpush1.bf16.msra.mxu0 0
    %878 = vmatprep.subr.bf16.mxu0 0
    %879 = vmatpush1.bf16.msra.mxu0 0
    %880 = vmatprep.subr.bf16.mxu0 0
    %881 = vmatpush1.bf16.msra.mxu0 0
    %882 = vmatprep.subr.bf16.mxu0 0
    %883 = vmatpush1.bf16.msra.mxu0 0
    %884 = vmatprep.subr.bf16.mxu0 0
    %885 = vmatpush1.bf16.msra.mxu0 0
    %886 = vmatprep.subr.bf16.mxu0 0
    %887 = vmatpush1.bf16.msra.mxu0 0
    %888 = vmatprep.subr.bf16.mxu0 0
    %889 = vmatpush1.bf16.msra.mxu0 0
    %890 = vmatprep.mubr.bf16.mxu0 0
    %891 = vmatmul.mubr.bf16.gmra.mrb[0].mxu0 %v856
    %v892 = vpop.f32.mrb[0].mxu0
    %v893 = vadd.f32 %v549, %v892
    %v894 = vpop.f32.mrb[0].mxu0
    %v895 = vpop.f32.mrb[0].mxu0
    %v896 = vpop.f32.mrb[0].mxu0
    %897 = vdwg.mxu0
    %898 = vmatprep.subr.bf16.mxu0 0
    %899 = vmatpush1.bf16.msra.mxu0 %v193
    %900 = vmatprep.subr.bf16.mxu0 0
    %901 = vmatpush1.bf16.msra.mxu0 %v194
    %902 = vmatprep.subr.bf16.mxu0 0
    %903 = vmatpush1.bf16.msra.mxu0 0
    %904 = vmatprep.subr.bf16.mxu0 0
    %905 = vmatpush1.bf16.msra.mxu0 0
    %906 = vmatprep.subr.bf16.mxu0 0
    %907 = vmatpush1.bf16.msra.mxu0 0
    %908 = vmatprep.subr.bf16.mxu0 0
    %909 = vmatpush1.bf16.msra.mxu0 0
    %910 = vmatprep.subr.bf16.mxu0 0
    %911 = vmatpush1.bf16.msra.mxu0 0
    %912 = vmatprep.subr.bf16.mxu0 0
    %913 = vmatpush1.bf16.msra.mxu0 0
    %914 = vmatprep.subr.bf16.mxu0 0
    %915 = vmatpush1.bf16.msra.mxu0 0
    %916 = vmatprep.subr.bf16.mxu0 0
    %917 = vmatpush1.bf16.msra.mxu0 0
    %918 = vmatprep.subr.bf16.mxu0 0
    %919 = vmatpush1.bf16.msra.mxu0 0
    %920 = vmatprep.subr.bf16.mxu0 0
    %921 = vmatpush1.bf16.msra.mxu0 0
    %922 = vmatprep.subr.bf16.mxu0 0
    %923 = vmatpush1.bf16.msra.mxu0 0
    %924 = vmatprep.subr.bf16.mxu0 0
    %925 = vmatpush1.bf16.msra.mxu0 0
    %926 = vmatprep.subr.bf16.mxu0 0
    %927 = vmatpush1.bf16.msra.mxu0 0
    %928 = vmatprep.subr.bf16.mxu0 0
    %929 = vmatpush1.bf16.msra.mxu0 0
    %930 = vmatprep.mubr.bf16.mxu0 0
    %931 = vmatmul.mubr.bf16.gmra.mrb[0].mxu0 %v555
    %v932 = vpop.f32.mrb[0].mxu0
    %v933 = vadd.f32 0.0, %v932
    %v934 = vpop.f32.mrb[0].mxu0
    %v935 = vpop.f32.mrb[0].mxu0
    %v936 = vpop.f32.mrb[0].mxu0
    %937 = vdwg.mxu0
    %938 = vmatprep.subr.bf16.mxu0 0
    %939 = vmatpush1.bf16.msra.mxu0 %v195
    %940 = vmatprep.subr.bf16.mxu0 0
    %941 = vmatpush1.bf16.msra.mxu0 %v196
    %942 = vmatprep.subr.bf16.mxu0 0
    %943 = vmatpush1.bf16.msra.mxu0 0
    %944 = vmatprep.subr.bf16.mxu0 0
    %945 = vmatpush1.bf16.msra.mxu0 0
    %946 = vmatprep.subr.bf16.mxu0 0
    %947 = vmatpush1.bf16.msra.mxu0 0
    %948 = vmatprep.subr.bf16.mxu0 0
    %949 = vmatpush1.bf16.msra.mxu0 0
    %950 = vmatprep.subr.bf16.mxu0 0
    %951 = vmatpush1.bf16.msra.mxu0 0
    %952 = vmatprep.subr.bf16.mxu0 0
    %953 = vmatpush1.bf16.msra.mxu0 0
    %954 = vmatprep.subr.bf16.mxu0 0
    %955 = vmatpush1.bf16.msra.mxu0 0
    %956 = vmatprep.subr.bf16.mxu0 0
    %957 = vmatpush1.bf16.msra.mxu0 0
    %958 = vmatprep.subr.bf16.mxu0 0
    %959 = vmatpush1.bf16.msra.mxu0 0
    %960 = vmatprep.subr.bf16.mxu0 0
    %961 = vmatpush1.bf16.msra.mxu0 0
    %962 = vmatprep.subr.bf16.mxu0 0
    %963 = vmatpush1.bf16.msra.mxu0 0
    %964 = vmatprep.subr.bf16.mxu0 0
    %965 = vmatpush1.bf16.msra.mxu0 0
    %966 = vmatprep.subr.bf16.mxu0 0
    %967 = vmatpush1.bf16.msra.mxu0 0
    %968 = vmatprep.subr.bf16.mxu0 0
    %969 = vmatpush1.bf16.msra.mxu0 0
    %970 = vmatprep.mubr.bf16.mxu0 0
    %971 = vmatmul.mubr.bf16.gmra.mrb[0].mxu0 %v598
    %v972 = vpop.f32.mrb[0].mxu0
    %v973 = vadd.f32 0.0, %v972
    %v974 = vpop.f32.mrb[0].mxu0
    %v975 = vpop.f32.mrb[0].mxu0
    %v976 = vpop.f32.mrb[0].mxu0
    %977 = vdwg.mxu0
    %978 = vmatprep.subr.bf16.mxu0 0
    %979 = vmatpush1.bf16.msra.mxu0 %v197
    %980 = vmatprep.subr.bf16.mxu0 0
    %981 = vmatpush1.bf16.msra.mxu0 %v198
    %982 = vmatprep.subr.bf16.mxu0 0
    %983 = vmatpush1.bf16.msra.mxu0 0
    %984 = vmatprep.subr.bf16.mxu0 0
    %985 = vmatpush1.bf16.msra.mxu0 0
    %986 = vmatprep.subr.bf16.mxu0 0
    %987 = vmatpush1.bf16.msra.mxu0 0
    %988 = vmatprep.subr.bf16.mxu0 0
    %989 = vmatpush1.bf16.msra.mxu0 0
    %990 = vmatprep.subr.bf16.mxu0 0
    %991 = vmatpush1.bf16.msra.mxu0 0
    %992 = vmatprep.subr.bf16.mxu0 0
    %993 = vmatpush1.bf16.msra.mxu0 0
    %994 = vmatprep.subr.bf16.mxu0 0
    %995 = vmatpush1.bf16.msra.mxu0 0
    %996 = vmatprep.subr.bf16.mxu0 0
    %997 = vmatpush1.bf16.msra.mxu0 0
    %998 = vmatprep.subr.bf16.mxu0 0
    %999 = vmatpush1.bf16.msra.mxu0 0
    %1000 = vmatprep.subr.bf16.mxu0 0
    %1001 = vmatpush1.bf16.msra.mxu0 0
    %1002 = vmatprep.subr.bf16.mxu0 0
    %1003 = vmatpush1.bf16.msra.mxu0 0
    %1004 = vmatprep.subr.bf16.mxu0 0
    %1005 = vmatpush1.bf16.msra.mxu0 0
    %1006 = vmatprep.subr.bf16.mxu0 0
    %1007 = vmatpush1.bf16.msra.mxu0 0
    %1008 = vmatprep.subr.bf16.mxu0 0
    %1009 = vmatpush1.bf16.msra.mxu0 0
    %1010 = vmatprep.mubr.bf16.mxu0 0
    %1011 = vmatmul.mubr.bf16.gmra.mrb[0].mxu0 %v641
    %v1012 = vpop.f32.mrb[0].mxu0
    %v1013 = vadd.f32 0.0, %v1012
    %v1014 = vpop.f32.mrb[0].mxu0
    %v1015 = vpop.f32.mrb[0].mxu0
    %v1016 = vpop.f32.mrb[0].mxu0
    %1017 = vdwg.mxu0
    %1018 = vmatprep.subr.bf16.mxu0 0
    %1019 = vmatpush1.bf16.msra.mxu0 %v199
    %1020 = vmatprep.subr.bf16.mxu0 0
    %1021 = vmatpush1.bf16.msra.mxu0 %v200
    %1022 = vmatprep.subr.bf16.mxu0 0
    %1023 = vmatpush1.bf16.msra.mxu0 0
    %1024 = vmatprep.subr.bf16.mxu0 0
    %1025 = vmatpush1.bf16.msra.mxu0 0
    %1026 = vmatprep.subr.bf16.mxu0 0
    %1027 = vmatpush1.bf16.msra.mxu0 0
    %1028 = vmatprep.subr.bf16.mxu0 0
    %1029 = vmatpush1.bf16.msra.mxu0 0
    %1030 = vmatprep.subr.bf16.mxu0 0
    %1031 = vmatpush1.bf16.msra.mxu0 0
    %1032 = vmatprep.subr.bf16.mxu0 0
    %1033 = vmatpush1.bf16.msra.mxu0 0
    %1034 = vmatprep.subr.bf16.mxu0 0
    %1035 = vmatpush1.bf16.msra.mxu0 0
    %1036 = vmatprep.subr.bf16.mxu0 0
    %1037 = vmatpush1.bf16.msra.mxu0 0
    %1038 = vmatprep.subr.bf16.mxu0 0
    %1039 = vmatpush1.bf16.msra.mxu0 0
    %1040 = vmatprep.subr.bf16.mxu0 0
    %1041 = vmatpush1.bf16.msra.mxu0 0
    %1042 = vmatprep.subr.bf16.mxu0 0
    %1043 = vmatpush1.bf16.msra.mxu0 0
    %1044 = vmatprep.subr.bf16.mxu0 0
    %1045 = vmatpush1.bf16.msra.mxu0 0
    %1046 = vmatprep.subr.bf16.mxu0 0
    %1047 = vmatpush1.bf16.msra.mxu0 0
    %1048 = vmatprep.subr.bf16.mxu0 0
    %1049 = vmatpush1.bf16.msra.mxu0 0
    %1050 = vmatprep.mubr.bf16.mxu0 0
    %1051 = vmatmul.mubr.bf16.gmra.mrb[0].mxu0 %v684
    %v1052 = vpop.f32.mrb[0].mxu0
    %v1053 = vadd.f32 0.0, %v1052
    %v1054 = vpop.f32.mrb[0].mxu0
    %v1055 = vpop.f32.mrb[0].mxu0
    %v1056 = vpop.f32.mrb[0].mxu0
    %1057 = vdwg.mxu0
    %1058 = vmatprep.subr.bf16.mxu0 0
    %1059 = vmatpush1.bf16.msra.mxu0 %v201
    %1060 = vmatprep.subr.bf16.mxu0 0
    %1061 = vmatpush1.bf16.msra.mxu0 %v202
    %1062 = vmatprep.subr.bf16.mxu0 0
    %1063 = vmatpush1.bf16.msra.mxu0 0
    %1064 = vmatprep.subr.bf16.mxu0 0
    %1065 = vmatpush1.bf16.msra.mxu0 0
    %1066 = vmatprep.subr.bf16.mxu0 0
    %1067 = vmatpush1.bf16.msra.mxu0 0
    %1068 = vmatprep.subr.bf16.mxu0 0
    %1069 = vmatpush1.bf16.msra.mxu0 0
    %1070 = vmatprep.subr.bf16.mxu0 0
    %1071 = vmatpush1.bf16.msra.mxu0 0
    %1072 = vmatprep.subr.bf16.mxu0 0
    %1073 = vmatpush1.bf16.msra.mxu0 0
    %1074 = vmatprep.subr.bf16.mxu0 0
    %1075 = vmatpush1.bf16.msra.mxu0 0
    %1076 = vmatprep.subr.bf16.mxu0 0
    %1077 = vmatpush1.bf16.msra.mxu0 0
    %1078 = vmatprep.subr.bf16.mxu0 0
    %1079 = vmatpush1.bf16.msra.mxu0 0
    %1080 = vmatprep.subr.bf16.mxu0 0
    %1081 = vmatpush1.bf16.msra.mxu0 0
    %1082 = vmatprep.subr.bf16.mxu0 0
    %1083 = vmatpush1.bf16.msra.mxu0 0
    %1084 = vmatprep.subr.bf16.mxu0 0
    %1085 = vmatpush1.bf16.msra.mxu0 0
    %1086 = vmatprep.subr.bf16.mxu0 0
    %1087 = vmatpush1.bf16.msra.mxu0 0
    %1088 = vmatprep.subr.bf16.mxu0 0
    %1089 = vmatpush1.bf16.msra.mxu0 0
    %1090 = vmatprep.mubr.bf16.mxu0 0
    %1091 = vmatmul.mubr.bf16.gmra.mrb[0].mxu0 %v727
    %v1092 = vpop.f32.mrb[0].mxu0
    %v1093 = vadd.f32 0.0, %v1092
    %v1094 = vpop.f32.mrb[0].mxu0
    %v1095 = vpop.f32.mrb[0].mxu0
    %v1096 = vpop.f32.mrb[0].mxu0
    %1097 = vdwg.mxu0
    %1098 = vmatprep.subr.bf16.mxu0 0
    %1099 = vmatpush1.bf16.msra.mxu0 %v203
    %1100 = vmatprep.subr.bf16.mxu0 0
    %1101 = vmatpush1.bf16.msra.mxu0 %v204
    %1102 = vmatprep.subr.bf16.mxu0 0
    %1103 = vmatpush1.bf16.msra.mxu0 0
    %1104 = vmatprep.subr.bf16.mxu0 0
    %1105 = vmatpush1.bf16.msra.mxu0 0
    %1106 = vmatprep.subr.bf16.mxu0 0
    %1107 = vmatpush1.bf16.msra.mxu0 0
    %1108 = vmatprep.subr.bf16.mxu0 0
    %1109 = vmatpush1.bf16.msra.mxu0 0
    %1110 = vmatprep.subr.bf16.mxu0 0
    %1111 = vmatpush1.bf16.msra.mxu0 0
    %1112 = vmatprep.subr.bf16.mxu0 0
    %1113 = vmatpush1.bf16.msra.mxu0 0
    %1114 = vmatprep.subr.bf16.mxu0 0
    %1115 = vmatpush1.bf16.msra.mxu0 0
    %1116 = vmatprep.subr.bf16.mxu0 0
    %1117 = vmatpush1.bf16.msra.mxu0 0
    %1118 = vmatprep.subr.bf16.mxu0 0
    %1119 = vmatpush1.bf16.msra.mxu0 0
    %1120 = vmatprep.subr.bf16.mxu0 0
    %1121 = vmatpush1.bf16.msra.mxu0 0
    %1122 = vmatprep.subr.bf16.mxu0 0
    %1123 = vmatpush1.bf16.msra.mxu0 0
    %1124 = vmatprep.subr.bf16.mxu0 0
    %1125 = vmatpush1.bf16.msra.mxu0 0
    %1126 = vmatprep.subr.bf16.mxu0 0
    %1127 = vmatpush1.bf16.msra.mxu0 0
    %1128 = vmatprep.subr.bf16.mxu0 0
    %1129 = vmatpush1.bf16.msra.mxu0 0
    %1130 = vmatprep.mubr.bf16.mxu0 0
    %1131 = vmatmul.mubr.bf16.gmra.mrb[0].mxu0 %v770
    %v1132 = vpop.f32.mrb[0].mxu0
    %v1133 = vadd.f32 0.0, %v1132
    %v1134 = vpop.f32.mrb[0].mxu0
    %v1135 = vpop.f32.mrb[0].mxu0
    %v1136 = vpop.f32.mrb[0].mxu0
    %1137 = vdwg.mxu0
    %1138 = vmatprep.subr.bf16.mxu0 0
    %1139 = vmatpush1.bf16.msra.mxu0 %v205
    %1140 = vmatprep.subr.bf16.mxu0 0
    %1141 = vmatpush1.bf16.msra.mxu0 %v206
    %1142 = vmatprep.subr.bf16.mxu0 0
    %1143 = vmatpush1.bf16.msra.mxu0 0
    %1144 = vmatprep.subr.bf16.mxu0 0
    %1145 = vmatpush1.bf16.msra.mxu0 0
    %1146 = vmatprep.subr.bf16.mxu0 0
    %1147 = vmatpush1.bf16.msra.mxu0 0
    %1148 = vmatprep.subr.bf16.mxu0 0
    %1149 = vmatpush1.bf16.msra.mxu0 0
    %1150 = vmatprep.subr.bf16.mxu0 0
    %1151 = vmatpush1.bf16.msra.mxu0 0
    %1152 = vmatprep.subr.bf16.mxu0 0
    %1153 = vmatpush1.bf16.msra.mxu0 0
    %1154 = vmatprep.subr.bf16.mxu0 0
    %1155 = vmatpush1.bf16.msra.mxu0 0
    %1156 = vmatprep.subr.bf16.mxu0 0
    %1157 = vmatpush1.bf16.msra.mxu0 0
    %1158 = vmatprep.subr.bf16.mxu0 0
    %1159 = vmatpush1.bf16.msra.mxu0 0
    %1160 = vmatprep.subr.bf16.mxu0 0
    %1161 = vmatpush1.bf16.msra.mxu0 0
    %1162 = vmatprep.subr.bf16.mxu0 0
    %1163 = vmatpush1.bf16.msra.mxu0 0
    %1164 = vmatprep.subr.bf16.mxu0 0
    %1165 = vmatpush1.bf16.msra.mxu0 0
    %1166 = vmatprep.subr.bf16.mxu0 0
    %1167 = vmatpush1.bf16.msra.mxu0 0
    %1168 = vmatprep.subr.bf16.mxu0 0
    %1169 = vmatpush1.bf16.msra.mxu0 0
    %1170 = vmatprep.mubr.bf16.mxu0 0
    %1171 = vmatmul.mubr.bf16.gmra.mrb[0].mxu0 %v813
    %v1172 = vpop.f32.mrb[0].mxu0
    %v1173 = vadd.f32 0.0, %v1172
    %v1174 = vpop.f32.mrb[0].mxu0
    %v1175 = vpop.f32.mrb[0].mxu0
    %v1176 = vpop.f32.mrb[0].mxu0
    %1177 = vdwg.mxu0
    %1178 = vmatprep.subr.bf16.mxu0 0
    %1179 = vmatpush1.bf16.msra.mxu0 %v207
    %1180 = vmatprep.subr.bf16.mxu0 0
    %1181 = vmatpush1.bf16.msra.mxu0 %v208
    %1182 = vmatprep.subr.bf16.mxu0 0
    %1183 = vmatpush1.bf16.msra.mxu0 0
    %1184 = vmatprep.subr.bf16.mxu0 0
    %1185 = vmatpush1.bf16.msra.mxu0 0
    %1186 = vmatprep.subr.bf16.mxu0 0
    %1187 = vmatpush1.bf16.msra.mxu0 0
    %1188 = vmatprep.subr.bf16.mxu0 0
    %1189 = vmatpush1.bf16.msra.mxu0 0
    %1190 = vmatprep.subr.bf16.mxu0 0
    %1191 = vmatpush1.bf16.msra.mxu0 0
    %1192 = vmatprep.subr.bf16.mxu0 0
    %1193 = vmatpush1.bf16.msra.mxu0 0
    %1194 = vmatprep.subr.bf16.mxu0 0
    %1195 = vmatpush1.bf16.msra.mxu0 0
    %1196 = vmatprep.subr.bf16.mxu0 0
    %1197 = vmatpush1.bf16.msra.mxu0 0
    %1198 = vmatprep.subr.bf16.mxu0 0
    %1199 = vmatpush1.bf16.msra.mxu0 0
    %1200 = vmatprep.subr.bf16.mxu0 0
    %1201 = vmatpush1.bf16.msra.mxu0 0
    %1202 = vmatprep.subr.bf16.mxu0 0
    %1203 = vmatpush1.bf16.msra.mxu0 0
    %1204 = vmatprep.subr.bf16.mxu0 0
    %1205 = vmatpush1.bf16.msra.mxu0 0
    %1206 = vmatprep.subr.bf16.mxu0 0
    %1207 = vmatpush1.bf16.msra.mxu0 0
    %1208 = vmatprep.subr.bf16.mxu0 0
    %1209 = vmatpush1.bf16.msra.mxu0 0
    %1210 = vmatprep.mubr.bf16.mxu0 0
    %1211 = vmatmul.mubr.bf16.gmra.mrb[0].mxu0 %v856
    %v1212 = vpop.f32.mrb[0].mxu0
    %v1213 = vadd.f32 0.0, %v1212
    %v1214 = vpop.f32.mrb[0].mxu0
    %v1215 = vpop.f32.mrb[0].mxu0
    %v1216 = vpop.f32.mrb[0].mxu0
    %1217 = vdwg.mxu0
    %v1218 = vadd.f32 %v592, %v933
    %v1219 = vadd.f32 %v635, %v973
    %v1220 = vadd.f32 %v678, %v1013
    %v1221 = vadd.f32 %v721, %v1053
    %v1222 = vadd.f32 %v764, %v1093
    %v1223 = vadd.f32 %v807, %v1133
    %v1224 = vadd.f32 %v850, %v1173
    %v1225 = vadd.f32 %v893, %v1213
    %1226 = vst [vmem:[#allocation7] sm:$0xff] %v1218
    %1227 = vst [vmem:[#allocation7 + $0x8] sm:$0xff] %v1219
    %1228 = vst [vmem:[#allocation7 + $0x10] sm:$0xff] %v1220
    %1229 = vst [vmem:[#allocation7 + $0x18] sm:$0xff] %v1221
    %1230 = vst [vmem:[#allocation7 + $0x20] sm:$0xff] %v1222
    %1231 = vst [vmem:[#allocation7 + $0x28] sm:$0xff] %v1223
    %1232 = vst [vmem:[#allocation7 + $0x30] sm:$0xff] %v1224
    %1233 = vst [vmem:[#allocation7 + $0x38] sm:$0xff] %v1225
    // Predicated region
    $region18: #{tpu_custom_call.1} parent=1 // pred_check
      _
    $region19: #{tpu_custom_call.1} parent=1 // pred_check_branch
      %1235 = sbr.rel (0) target = $region21
    $region20: #{tpu_custom_call.1} parent=1 // pred_region
      %s1237 = ssub.s32 1024, 1024
      %1238 = vsyncadd [#allocation4], %s1237
      %s1239 = sshll.u32 [#allocation7], 4
      %s1240 = int_to_ptr.vmem [resolvable:$true] %s1239
      %1245 = dma.vmem_to_hbm [thread:$0]  %s1240, 1024, %s2, [#allocation4], 128, 128, 8
    $region21: #{tpu_custom_call.1} parent=1 // pred_fallthru
      _
    // Predicated region
    $region22: #{tpu_custom_call.1} parent=1 // pred_check
      _
    $region23: #{tpu_custom_call.1} parent=1 // pred_check_branch
      %1247 = sbr.rel (0) target = $region25
    $region24: #{tpu_custom_call.1} parent=1 // pred_region
      %1248 = dma.done [#allocation4], 1024
    $region25: #{tpu_custom_call.1} parent=1 // pred_fallthru
      _
    %1249 = vsyncpa [#allocation3], 1
    %1250 = vsyncpa [#allocation6], 1
    %1251 = vsyncpa [#allocation4], 1

</llo_original>
